<compile_context>
chip_gen: v7x
topology: tpu7x:2x2x1
jax: 0.10.0
libtpu: 0.0.40
codegen_flags: <defaults>
</compile_context>

<pallas_src>
import functools

import numpy as np
import jax
import jax.numpy as jnp
from jax.experimental import pallas as pl
from jax.experimental.pallas import tpu as pltpu

_LANE = 128


def _round_up(x, m):
    return ((x + m - 1) // m) * m


def _default_vmem_cap():
    """~3/4 of this generation's physical VMEM (≈48 MiB v7x, ≈96 MiB v5e/v6e)."""
    try:
        info = pltpu.get_tpu_info()
        return (int(info.vmem_capacity_bytes) * 3) // 4
    except Exception:
        return 48 * 1024 * 1024  # safe on every generation


# ---------------------------------------------------------------------------
# Kernels
# ---------------------------------------------------------------------------
def _linear_fullk_kernel(x_ref, w_ref, b_ref, o_ref):
    # x_ref: (tm, D), w_ref: (D, c_pad) VMEM-resident, b_ref: (1, c_pad) f32.
    acc = jnp.dot(x_ref[...], w_ref[...], preferred_element_type=jnp.float32)
    o_ref[...] = (acc + b_ref[...]).astype(o_ref.dtype)


def _linear_ktiled_kernel(x_ref, w_ref, b_ref, o_ref, acc_ref, *, rem, tk):
    # Fallback for very large in_dim: f32 accumulator over the (innermost) K axis.
    k = pl.program_id(1)
    n_k = pl.num_programs(1)

    @pl.when(k == 0)
    def _():
        acc_ref[...] = jnp.zeros_like(acc_ref)

    x = x_ref[...]
    if rem != tk:  # static: K does not divide evenly -> mask the ragged last tile
        limit = jnp.where(k == n_k - 1, rem, tk)
        col = jax.lax.broadcasted_iota(jnp.int32, x.shape, 1)
        x = jnp.where(col < limit, x, jnp.zeros_like(x))

    acc_ref[...] += jnp.dot(x, w_ref[...], preferred_element_type=jnp.float32)

    @pl.when(k == n_k - 1)
    def _():
        o_ref[...] = (acc_ref[...] + b_ref[...]).astype(o_ref.dtype)


# ---------------------------------------------------------------------------
# Wrapper
# ---------------------------------------------------------------------------
def lr_model_forward(x, w_t, b, *, tm_max=1024, tk_max=4096,
                     stream_dtype=None, vmem_cap_bytes=None, force_tk=None):
    """out = x @ w_t + b   (== PyTorch nn.Linear forward: x @ W.T + b)."""
    B, D = x.shape
    Dw, C = w_t.shape
    assert D == Dw and b.shape == (C,)
    out_dtype = x.dtype

    # Optional HBM-bandwidth optimization (largest win on v5e): stream x / w_t in
    # bf16 while accumulating in f32.  Off by default (exact f32 semantics).
    if stream_dtype is not None:
        x = x.astype(stream_dtype)
        w_t = w_t.astype(stream_dtype)

    in_bytes = jnp.dtype(x.dtype).itemsize
    w_bytes = jnp.dtype(w_t.dtype).itemsize
    out_bytes = jnp.dtype(out_dtype).itemsize
    sublane = 16 if in_bytes == 2 else 8

    cap = int(vmem_cap_bytes) if vmem_cap_bytes is not None else _default_vmem_cap()
    budget = (cap * 9) // 10  # headroom for Mosaic-internal scratch

    # Lane-dense output columns: pad n_classes up to a multiple of 128.  Only the
    # (tiny) weight / bias are padded; x itself is never padded or copied in HBM.
    c_pad = _round_up(max(C, _LANE), _LANE)
    if c_pad != C:
        w_t = jnp.pad(w_t, ((0, 0), (0, c_pad - C)))
        b = jnp.pad(b, (0, c_pad - C))
    b2 = b.astype(jnp.float32).reshape(1, c_pad)

    # ---- batch (M) tile ----
    tm = min(_round_up(tm_max, sublane), _round_up(B, sublane))
    if B > 256:  # megacore (v7x): keep >= 2 batch tiles so both TensorCores work
        tm = min(tm, _round_up(-(-B // 2), sublane))
    if tm >= B:
        tm = B  # full-dim block is always layout-legal

    def _fullk_bytes(tm_):
        return (2 * tm_ * D * in_bytes          # x tiles (double-buffered)
                + 2 * D * c_pad * w_bytes       # weight slab (counted 2x, conservative)
                + 2 * tm_ * c_pad * out_bytes   # output tiles
                + 2 * c_pad * 4)                # bias

    # ---- path 1: single full-K pass (preferred) ----
    use_fullk = force_tk is None
    if use_fullk:
        tm_fk = tm
        while _fullk_bytes(tm_fk) > budget and tm_fk > 128:
            tm_fk = max(128, _round_up(tm_fk // 2, sublane))
        use_fullk = _fullk_bytes(tm_fk) <= budget

    if use_fullk:
        tm = tm_fk
        n_m = pl.cdiv(B, tm)
        out_padded = pl.pallas_call(
            _linear_fullk_kernel,
            out_shape=jax.ShapeDtypeStruct((B, c_pad), out_dtype),
            grid=(n_m,),
            in_specs=[
                pl.BlockSpec((tm, D), lambda i: (i, 0)),       # x: contiguous row tiles
                pl.BlockSpec((D, c_pad), lambda i: (0, 0)),    # weight: VMEM-resident
                pl.BlockSpec((1, c_pad), lambda i: (0, 0)),    # bias: VMEM-resident
            ],
            out_specs=pl.BlockSpec((tm, c_pad), lambda i: (i, 0)),
            compiler_params=pltpu.CompilerParams(
                dimension_semantics=("parallel",),
                vmem_limit_bytes=cap,
            ),
            cost_estimate=pl.CostEstimate(
                flops=2 * B * D * c_pad,
                transcendentals=0,
                bytes_accessed=(B * D * in_bytes + D * c_pad * w_bytes
                                + B * c_pad * out_bytes),
            ),
        )(x, w_t, b2)
        return out_padded[:, :C]

    # ---- path 2: K-tiled accumulation (very large in_dim, or forced for testing) ----
    def _ktiled_bytes(tm_, tk_):
        return (2 * tm_ * tk_ * in_bytes
                + 2 * tk_ * c_pad * w_bytes
                + 2 * tm_ * c_pad * out_bytes
                + tm_ * c_pad * 4               # f32 accumulator scratch
                + 2 * c_pad * 4)

    if force_tk is not None:
        assert force_tk % _LANE == 0
        tk = int(force_tk)
    else:
        tk = max(_LANE, (min(tk_max, _round_up(D, _LANE)) // _LANE) * _LANE)
        while _ktiled_bytes(tm, tk) > budget and tk > _LANE:
            tk = max(_LANE, ((tk // 2) // _LANE) * _LANE)
        while _ktiled_bytes(tm, tk) > budget and tm > sublane:
            tm = max(sublane, _round_up(tm // 2, sublane))

    n_m = pl.cdiv(B, tm)
    n_k = pl.cdiv(D, tk)
    d_pad = n_k * tk
    rem = D - (n_k - 1) * tk  # valid K columns in the last tile (masked in-kernel)
    if d_pad != D:
        # Zero-padding the small weight along K is cheap; x is never padded, the
        # ragged last x tile is masked inside the kernel instead.
        w_t = jnp.pad(w_t, ((0, d_pad - D), (0, 0)))

    kernel = functools.partial(_linear_ktiled_kernel, rem=rem, tk=tk)
    out_padded = pl.pallas_call(
        kernel,
        out_shape=jax.ShapeDtypeStruct((B, c_pad), out_dtype),
        grid=(n_m, n_k),
        in_specs=[
            pl.BlockSpec((tm, tk), lambda i, k: (i, k)),
            # NOTE: with K innermost the weight tile is re-fetched per grid step;
            # this path only triggers when the full weight cannot stay VMEM-resident
            # alongside a full-K x tile anyway (the common LR shapes take path 1).
            pl.BlockSpec((tk, c_pad), lambda i, k: (k, 0)),
            pl.BlockSpec((1, c_pad), lambda i, k: (0, 0)),
        ],
        out_specs=pl.BlockSpec((tm, c_pad), lambda i, k: (i, 0)),
        scratch_shapes=[pltpu.VMEM((tm, c_pad), jnp.float32)],
        compiler_params=pltpu.CompilerParams(
            dimension_semantics=("parallel", "arbitrary"),
            vmem_limit_bytes=cap,
        ),
        cost_estimate=pl.CostEstimate(
            flops=2 * B * D * c_pad,
            transcendentals=0,
            bytes_accessed=(B * D * in_bytes + n_m * d_pad * c_pad * w_bytes
                            + B * c_pad * out_bytes),
        ),
    )(x, w_t, b2)
    return out_padded[:, :C]


# ---------------------------------------------------------------------------
# Deterministic init + self-test
# ---------------------------------------------------------------------------
def init_lr_params(key, in_dim, n_classes, dtype=jnp.float32):
    """nn.Linear-style uniform(-1/sqrt(in_dim), 1/sqrt(in_dim)); weight pre-transposed."""
    kw, kb = jax.random.split(key)
    bound = 1.0 / float(np.sqrt(in_dim))
    w_t = jax.random.uniform(kw, (in_dim, n_classes), dtype, -bound, bound)
    b = jax.random.uniform(kb, (n_classes,), dtype, -bound, bound)
    return w_t, b


def _bf16_representable(a):
    # Round test inputs to bf16-representable f32 values so the check is independent
    # of the MXU's f32 pass decomposition and a tight 1e-4 tolerance is safe.
    return a.astype(jnp.bfloat16).astype(jnp.float32)


def _check(out, x, w_t, b, atol=1e-4):
    ref = (np.asarray(x, np.float64) @ np.asarray(w_t, np.float64)
           + np.asarray(b, np.float64)[None, :])
    assert out.shape == ref.shape, (out.shape, ref.shape)
    err = float(np.max(np.abs(np.asarray(out, np.float64) - ref)))
    assert err < atol, f"max abs err {err}"


if __name__ == "__main__":
    # 1) small, module-consistent shapes (full-K path, single batch tile)
    k_x, k_p = jax.random.split(jax.random.PRNGKey(0))
    B, D, C = 8, 32, 16
    x = _bf16_representable(jax.random.normal(k_x, (B, D), jnp.float32))
    w_t, b = init_lr_params(k_p, D, C)
    w_t, b = _bf16_representable(w_t), _bf16_representable(b)
    out = jax.block_until_ready(lr_model_forward(x, w_t, b))
    _check(out, x, w_t, b)

    # 2) ragged batch + padded class columns + megacore batch split (full-K path)
    k_x2, k_p2 = jax.random.split(jax.random.PRNGKey(1))
    B2, D2, C2 = 260, 384, 10
    x2 = _bf16_representable(jax.random.normal(k_x2, (B2, D2), jnp.float32))
    w_t2, b2 = init_lr_params(k_p2, D2, C2)
    w_t2, b2 = _bf16_representable(w_t2), _bf16_representable(b2)
    out2 = jax.block_until_ready(lr_model_forward(x2, w_t2, b2))
    _check(out2, x2, w_t2, b2)

    # 3) forced K-tiled fallback with a ragged (in-kernel masked) final K tile
    k_x3, k_p3 = jax.random.split(jax.random.PRNGKey(2))
    B3, D3, C3 = 64, 300, 10
    x3 = _bf16_representable(jax.random.normal(k_x3, (B3, D3), jnp.float32))
    w_t3, b3 = init_lr_params(k_p3, D3, C3)
    w_t3, b3 = _bf16_representable(w_t3), _bf16_representable(b3)
    out3 = jax.block_until_ready(lr_model_forward(x3, w_t3, b3, force_tk=128))
    _check(out3, x3, w_t3, b3)

    # TODO(synk): forward_proba / forward_labels (softmax + argmax heads) are trivial
    # post-ops and are left to plain jnp if ever needed; forward() itself is covered.
    print("KERNEL_OK")
</pallas_src>

<mosaic_0001>
module attributes {stable_mosaic.version = 11 : i64} {
  func.func @_linear_fullk_kernel(%arg0: i32, %arg1: memref<8x32xf32, #tpu.memory_space<vmem>>, %arg2: memref<32x128xf32, #tpu.memory_space<vmem>>, %arg3: memref<1x128xf32, #tpu.memory_space<vmem>>, %arg4: memref<8x128xf32, #tpu.memory_space<vmem>>) attributes {dimension_semantics = [#tpu.dimension_semantics<parallel>], iteration_bounds = array<i64: 1>, scalar_prefetch = 0 : i64, scratch_operands = 0 : i64, tpu.core_type = #tpu.core_type<tc>, window_params = [{transform_indices = @transform_0, window_bounds = array<i64: 8, 32>}, {pipeline_mode = #tpu.pipeline_mode<synchronous>, transform_indices = @transform_1, window_bounds = array<i64: 32, 128>}, {pipeline_mode = #tpu.pipeline_mode<synchronous>, transform_indices = @transform_2, window_bounds = array<i64: 1, 128>}, {transform_indices = @transform_3, window_bounds = array<i64: 8, 128>}]} {
    %c0 = arith.constant 0 : index
    %c0_0 = arith.constant 0 : index
    %0 = vector.load %arg1[%c0, %c0_0] : memref<8x32xf32, #tpu.memory_space<vmem>>, vector<8x32xf32>
    %c0_1 = arith.constant 0 : index
    %c0_2 = arith.constant 0 : index
    %1 = vector.load %arg2[%c0_1, %c0_2] : memref<32x128xf32, #tpu.memory_space<vmem>>, vector<32x128xf32>
    %cst = arith.constant dense<0.000000e+00> : vector<8x128xf32>
    %2 = tpu.matmul %0, %1, %cst {dimension_numbers = #tpu.dot_dimension_numbers<[1], [0], [0], [1], [0, 0, 1, 1], [], []>} : vector<8x32xf32>, vector<32x128xf32>, vector<8x128xf32> -> vector<8x128xf32>
    %c0_3 = arith.constant 0 : index
    %c0_4 = arith.constant 0 : index
    %3 = vector.load %arg3[%c0_3, %c0_4] : memref<1x128xf32, #tpu.memory_space<vmem>>, vector<1x128xf32>
    %4 = vector.broadcast %3 : vector<1x128xf32> to vector<8x128xf32>
    %5 = arith.addf %2, %4 : vector<8x128xf32>
    %c0_5 = arith.constant 0 : index
    %c0_6 = arith.constant 0 : index
    %6 = vector.load %arg4[%c0_5, %c0_6] : memref<8x128xf32, #tpu.memory_space<vmem>>, vector<8x128xf32>
    tpu.vector_store %arg4[%c0_5, %c0_6], %5 {strides = array<i32>} : memref<8x128xf32, #tpu.memory_space<vmem>>, vector<8x128xf32>,
    return
  }
  func.func @transform_0(%arg0: i32) -> (i32, i32) {
    %c0_i32 = arith.constant 0 : i32
    %c0_i32_0 = arith.constant 0 : i32
    return %arg0, %c0_i32 : i32, i32
  }
  func.func @transform_1(%arg0: i32) -> (i32, i32) {
    %c0_i32 = arith.constant 0 : i32
    %c0_i32_0 = arith.constant 0 : i32
    %c0_i32_1 = arith.constant 0 : i32
    return %c0_i32, %c0_i32_0 : i32, i32
  }
  func.func @transform_2(%arg0: i32) -> (i32, i32) {
    %c0_i32 = arith.constant 0 : i32
    %c0_i32_0 = arith.constant 0 : i32
    %c0_i32_1 = arith.constant 0 : i32
    return %c0_i32, %c0_i32_0 : i32, i32
  }
  func.func @transform_3(%arg0: i32) -> (i32, i32) {
    %c0_i32 = arith.constant 0 : i32
    %c0_i32_0 = arith.constant 0 : i32
    return %arg0, %c0_i32 : i32, i32
  }
}

</mosaic_0001>

<llo_original>
// kernel: tpu_custom_call.1
$region0: #{tpu_custom_call.1}
  #allocation0 [shape = 'u32[]', space=smem, size = 0x4, offset = 0x4, fixed_abs, tag = 'smem constant byte address 0x4 - core index']
  #allocation1 [shape = 'u32[144,128]{1,0:T(1,128)}', space=vmem, size = 0x12000, scoped, tag = 'internal scratch']
  %s0 = inlined_call_operand.hbm [shape: f32[8,32], index: 0, kind: input, shape index: {}]
  %s1 = inlined_call_operand.hbm [shape: f32[32,128], index: 1, kind: input, shape index: {}]
  %s2 = inlined_call_operand.vmem [shape: f32[1,128], index: 2, kind: input, shape index: {}]
  %s3 = inlined_call_operand.hbm [shape: f32[8,128], index: 3, kind: output, shape index: {}]
  %s4 = sld [smem:[#allocation0]]
  $region30: #{tpu_custom_call.1} parent=0
    _
  %s6 = ssub.s32 1, %s4
  %s7 = scalar_select 0, %s6, %s4
  $region1: #{tpu_custom_call.1} parent=0
    #allocation2 [shape = 'u8[4096]{0}', space=vmem, size = 0x1000, scoped, tag = 'input window, operand 0, single buffered']
    #allocation3 [shape = 's32[1]{0}', space=sflag, size = 0x4, scoped, tag = 'scoped memory for tpu_custom_call.1']
    #allocation4 [shape = 's32[1]{0}', space=sflag, size = 0x4, scoped, tag = 'scoped memory for tpu_custom_call.1']
    #allocation5 [shape = 'u8[16384]{0}', space=vmem, size = 0x4000, scoped, tag = 'input window, operand 1, single buffered']
    #allocation6 [shape = 's32[1]{0}', space=sflag, size = 0x4, scoped, tag = 'scoped memory for tpu_custom_call.1']
    #allocation7 [shape = 'u8[4096]{0}', space=vmem, size = 0x1000, scoped, tag = 'output window, operand 0, single buffered']
    %8 = vsyncpa [#allocation3], 0
    %9 = vsyncpa [#allocation6], 0
    %10 = vsyncpa [#allocation4], 0
    // Predicated region
    $region2: #{tpu_custom_call.1} parent=1 // pred_check
      _
    $region3: #{tpu_custom_call.1} parent=1 // pred_check_branch
      %12 = sbr.rel (0) target = $region5
    $region4: #{tpu_custom_call.1} parent=1 // pred_region
      %s14 = ssub.s32 128, 128
      %15 = vsyncadd [#allocation3], %s14
      %s17 = sshll.u32 [#allocation2], 4
      %s18 = int_to_ptr.vmem [resolvable:$true] %s17
      %20 = dma.hbm_to_vmem [thread:$0]  %s0, 128, %s18, [#allocation3]
    $region5: #{tpu_custom_call.1} parent=1 // pred_fallthru
      _
    // Predicated region
    $region6: #{tpu_custom_call.1} parent=1 // pred_check
      _
    $region7: #{tpu_custom_call.1} parent=1 // pred_check_branch
      %22 = sbr.rel (0) target = $region9
    $region8: #{tpu_custom_call.1} parent=1 // pred_region
      %s24 = ssub.s32 512, 512
      %25 = vsyncadd [#allocation6], %s24
      %s26 = sshll.u32 [#allocation5], 4
      %s27 = int_to_ptr.vmem [resolvable:$true] %s26
      %32 = dma.hbm_to_vmem [thread:$0]  %s1, 512, %s27, [#allocation6], 128, 128, 8
    $region9: #{tpu_custom_call.1} parent=1 // pred_fallthru
      _
    // Predicated region
    $region10: #{tpu_custom_call.1} parent=1 // pred_check
      _
    $region11: #{tpu_custom_call.1} parent=1 // pred_check_branch
      %34 = sbr.rel (0) target = $region13
    $region12: #{tpu_custom_call.1} parent=1 // pred_region
      _
    $region13: #{tpu_custom_call.1} parent=1 // pred_fallthru
      _
    // Predicated region
    $region14: #{tpu_custom_call.1} parent=1 // pred_check
      _
    $region15: #{tpu_custom_call.1} parent=1 // pred_check_branch
      %36 = sbr.rel (0) target = $region17
    $region16: #{tpu_custom_call.1} parent=1 // pred_region
      %37 = dma.done [#allocation3], 128
    $region17: #{tpu_custom_call.1} parent=1 // pred_fallthru
      _
    // Predicated region
    $region18: #{tpu_custom_call.1} parent=1 // pred_check
      _
    $region19: #{tpu_custom_call.1} parent=1 // pred_check_branch
      %39 = sbr.rel (0) target = $region21
    $region20: #{tpu_custom_call.1} parent=1 // pred_region
      %40 = dma.done [#allocation6], 512
    $region21: #{tpu_custom_call.1} parent=1 // pred_fallthru
      _
    %v41 = vld [vmem:[#allocation2] sm:$0xff]
    %v42 = vld [vmem:[#allocation5] sm:$0xff]
    %v43 = vld [vmem:[#allocation5 + $0x8] sm:$0xff]
    %v44 = vld [vmem:[#allocation5 + $0x10] sm:$0xff]
    %v45 = vld [vmem:[#allocation5 + $0x18] sm:$0xff]
    %v46 = vld [vmem:[%s2] sm:$0x1]
    %v48 = vlaneseq
    %v49 = vshrl.u32 %v48, 7
    %v50 = vsub.s32 0, %v49
    %v51 = vrot.slane %v46, %v50
    %vm53 = vcmask 261120
    %v55 = vsel %vm53, %v41, 0
    %57 = vmatprep.subr.mxu0 0.0
    %58 = vmatpush1.msra.mxu0 %v42
    %59 = vmatprep.subr.mxu0 0.0
    %60 = vmatpush1.msra.mxu0 %v43
    %61 = vmatprep.subr.mxu0 0.0
    %62 = vmatpush1.msra.mxu0 %v44
    %63 = vmatprep.subr.mxu0 0.0
    %64 = vmatpush1.msra.mxu0 %v45
    %65 = vmatprep.subr.mxu0 0.0
    %66 = vmatpush1.msra.mxu0 0.0
    %67 = vmatprep.subr.mxu0 0.0
    %68 = vmatpush1.msra.mxu0 0.0
    %69 = vmatprep.subr.mxu0 0.0
    %70 = vmatpush1.msra.mxu0 0.0
    %71 = vmatprep.subr.mxu0 0.0
    %72 = vmatpush1.msra.mxu0 0.0
    %73 = vmatprep.subr.mxu0 0.0
    %74 = vmatpush1.msra.mxu0 0.0
    %75 = vmatprep.subr.mxu0 0.0
    %76 = vmatpush1.msra.mxu0 0.0
    %77 = vmatprep.subr.mxu0 0.0
    %78 = vmatpush1.msra.mxu0 0.0
    %79 = vmatprep.subr.mxu0 0.0
    %80 = vmatpush1.msra.mxu0 0.0
    %81 = vmatprep.subr.mxu0 0.0
    %82 = vmatpush1.msra.mxu0 0.0
    %83 = vmatprep.subr.mxu0 0.0
    %84 = vmatpush1.msra.mxu0 0.0
    %85 = vmatprep.subr.mxu0 0.0
    %86 = vmatpush1.msra.mxu0 0.0
    %87 = vmatprep.subr.mxu0 0.0
    %88 = vmatpush1.msra.mxu0 0.0
    %89 = vmatprep.subr.mxu0 0.0
    %90 = vmatpush1.msra.mxu0 0.0
    %91 = vmatprep.subr.mxu0 0.0
    %92 = vmatpush1.msra.mxu0 0.0
    %93 = vmatprep.subr.mxu0 0.0
    %94 = vmatpush1.msra.mxu0 0.0
    %95 = vmatprep.subr.mxu0 0.0
    %96 = vmatpush1.msra.mxu0 0.0
    %97 = vmatprep.subr.mxu0 0.0
    %98 = vmatpush1.msra.mxu0 0.0
    %99 = vmatprep.subr.mxu0 0.0
    %100 = vmatpush1.msra.mxu0 0.0
    %101 = vmatprep.subr.mxu0 0.0
    %102 = vmatpush1.msra.mxu0 0.0
    %103 = vmatprep.subr.mxu0 0.0
    %104 = vmatpush1.msra.mxu0 0.0
    %105 = vmatprep.subr.mxu0 0.0
    %106 = vmatpush1.msra.mxu0 0.0
    %107 = vmatprep.subr.mxu0 0.0
    %108 = vmatpush1.msra.mxu0 0.0
    %109 = vmatprep.subr.mxu0 0.0
    %110 = vmatpush1.msra.mxu0 0.0
    %111 = vmatprep.subr.mxu0 0.0
    %112 = vmatpush1.msra.mxu0 0.0
    %113 = vmatprep.subr.mxu0 0.0
    %114 = vmatpush1.msra.mxu0 0.0
    %115 = vmatprep.subr.mxu0 0.0
    %116 = vmatpush1.msra.mxu0 0.0
    %117 = vmatprep.subr.mxu0 0.0
    %118 = vmatpush1.msra.mxu0 0.0
    %119 = vmatprep.subr.mxu0 0.0
    %120 = vmatpush1.msra.mxu0 0.0
    %121 = vmatprep.mubr.f32.mxu0 0.0
    %122 = vmatmul.mubr.f32.gmra.mrb[0].mxu0 %v55
    %v123 = vpop.f32.mrb[0].mxu0
    %v124 = vadd.f32 %v51, %v123
    %v125 = vpop.f32.mrb[0].mxu0
    %126 = vdwg.mxu0
    %127 = vst [vmem:[#allocation7] sm:$0xff] %v124
    // Predicated region
    $region22: #{tpu_custom_call.1} parent=1 // pred_check
      _
    $region23: #{tpu_custom_call.1} parent=1 // pred_check_branch
      %129 = sbr.rel (0) target = $region25
    $region24: #{tpu_custom_call.1} parent=1 // pred_region
      %s131 = ssub.s32 128, 128
      %132 = vsyncadd [#allocation4], %s131
      %s134 = sshll.u32 [#allocation7], 4
      %s135 = int_to_ptr.vmem [resolvable:$true] %s134
      %137 = dma.vmem_to_hbm [thread:$0]  %s135, 128, %s3, [#allocation4]
    $region25: #{tpu_custom_call.1} parent=1 // pred_fallthru
      _
    // Predicated region
    $region26: #{tpu_custom_call.1} parent=1 // pred_check
      _
    $region27: #{tpu_custom_call.1} parent=1 // pred_check_branch
      %139 = sbr.rel (0) target = $region29
    $region28: #{tpu_custom_call.1} parent=1 // pred_region
      %140 = dma.done [#allocation4], 128
    $region29: #{tpu_custom_call.1} parent=1 // pred_fallthru
      _
    %141 = vsyncpa [#allocation3], 1
    %142 = vsyncpa [#allocation6], 1
    %143 = vsyncpa [#allocation4], 1

</llo_original>
